<compile_context>
chip_gen: v7x
topology: tpu7x:2x2x1
jax: 0.10.0
libtpu: 0.0.40
codegen_flags: <defaults>
</compile_context>

<pallas_src>
import functools

import jax
import jax.numpy as jnp
from jax.experimental import pallas as pl
from jax.experimental.pallas import tpu as pltpu


LANE = 128


def _round_up(x, m):
    return (x + m - 1) // m * m


def _nplm_kernel(ids_ref, embw_ref, w1_ref, b1_ref, w2_ref, b2_ref, out_ref, *,
                 embedding_dim, context_size):
    """One batch tile.

    ids_ref : (TB, C)       int32  token ids for this batch tile
    embw_ref: (V_pad, E)    bf16   embedding table (padded rows are zero)
    w1_ref  : (C*E, H)      bf16   linear1 weight, pre-transposed
    b1_ref  : (1, H)        f32
    w2_ref  : (H, V_pad)    bf16   linear2 weight, pre-transposed, zero pad cols
    b2_ref  : (1, V_pad)    f32    pad cols pre-set to -1e30 (masks log-softmax)
    out_ref : (TB, V_pad)   f32    log-probs (pad cols sliced off outside)
    """
    tb = ids_ref.shape[0]
    v_pad = embw_ref.shape[0]
    E = embedding_dim
    H = w1_ref.shape[1]

    ids = ids_ref[...]                                     # (TB, C) int32
    embw = embw_ref[...]                                    # (V_pad, E) bf16
    w1 = w1_ref[...]                                        # (C*E, H) bf16

    # Hoisted iota (JAX does not CSE broadcast_in_dim across the unrolled loop).
    col = jax.lax.broadcasted_iota(jnp.int32, (tb, v_pad), 1)

    # Fused embedding-gather + linear1: h = sum_c embw[ids[:,c]] @ w1_c
    h = jnp.zeros((tb, H), jnp.float32)
    for c in range(context_size):
        idc = ids[:, c:c + 1]                               # (TB, 1)
        onehot = (col == idc).astype(embw.dtype)            # (TB, V_pad) bf16
        # Exact gather via MXU (single nonzero per row -> no rounding).
        x_c = jnp.dot(onehot, embw, preferred_element_type=jnp.float32)   # (TB, E)
        h = h + jnp.dot(x_c.astype(w1.dtype), w1[c * E:(c + 1) * E, :],
                        preferred_element_type=jnp.float32)               # (TB, H)

    h = jnp.maximum(h + b1_ref[...], 0.0)                   # ReLU, f32

    # linear2 (+ bias that carries the -1e30 vocab-pad mask)
    logits = jnp.dot(h.astype(w2_ref.dtype), w2_ref[...],
                     preferred_element_type=jnp.float32) + b2_ref[...]     # (TB, V_pad)

    # Numerically-stable log_softmax over the lane-aligned V_pad axis.
    m = jnp.max(logits, axis=-1, keepdims=True)
    shifted = logits - m
    lse = jnp.log(jnp.sum(jnp.exp(shifted), axis=-1, keepdims=True))
    out_ref[...] = shifted - lse


def prepare_params(embed_w, w1, b1, w2, b2, *, compute_dtype=jnp.bfloat16):
    """One-time weight prep: transpose, pad to lane multiples, cast. NOT per step."""
    V, E = embed_w.shape
    H, K = w1.shape                       # K = context_size * embedding_dim
    assert w2.shape == (V, H)
    V_pad = _round_up(V, LANE)

    embw_p = jnp.zeros((V_pad, E), compute_dtype).at[:V, :].set(
        embed_w.astype(compute_dtype))
    w1_t = w1.T.astype(compute_dtype)                                    # (K, H)
    b1_r = b1.reshape(1, H).astype(jnp.float32)
    w2_t = jnp.zeros((H, V_pad), compute_dtype).at[:, :V].set(w2.T.astype(compute_dtype))
    # Bake the vocab-pad mask into the bias: pad logits become -1e30 for free.
    b2_r = jnp.full((1, V_pad), -1e30, jnp.float32).at[:, :V].set(b2.astype(jnp.float32))

    return dict(embw=embw_p, w1=w1_t, b1=b1_r, w2=w2_t, b2=b2_r,
                V=V, E=E, H=H, K=K, V_pad=V_pad, compute_dtype=compute_dtype)


def nplm_forward(inputs, params, *, tile_b=256, interpret=False):
    """inputs: (B, C) int token ids.  Returns (B, V) float32 log-probs."""
    B, C = inputs.shape
    E, K, H = params["E"], params["K"], params["H"]
    V, V_pad = params["V"], params["V_pad"]
    assert C * E == K, "context_size * embedding_dim mismatch with linear1"

    # Clamp the batch tile so tiny batches don't pay for padded rows, keep it a
    # multiple of 8 (sublane rule).
    tile_b = max(8, min(_round_up(tile_b, 8), _round_up(B, 8)))
    B_pad = _round_up(B, tile_b)

    ids = inputs.astype(jnp.int32)
    if B_pad != B:
        # Pad with token 0: padded rows compute garbage that is sliced off below.
        ids = jnp.zeros((B_pad, C), jnp.int32).at[:B, :].set(ids)

    grid = (B_pad // tile_b,)
    kernel = functools.partial(_nplm_kernel, embedding_dim=E, context_size=C)

    out = pl.pallas_call(
        kernel,
        out_shape=jax.ShapeDtypeStruct((B_pad, V_pad), jnp.float32),
        grid_spec=pltpu.PrefetchScalarGridSpec(
            num_scalar_prefetch=0,
            grid=grid,
            in_specs=[
                # token ids: tiled over the batch grid (only 4 B * C per row of HBM)
                pl.BlockSpec((tile_b, C), lambda i: (i, 0)),
                # embedding / weights / biases: constant block -> VMEM-resident
                pl.BlockSpec((V_pad, E), lambda i: (0, 0)),
                pl.BlockSpec((K, H), lambda i: (0, 0)),
                pl.BlockSpec((1, H), lambda i: (0, 0)),
                pl.BlockSpec((H, V_pad), lambda i: (0, 0)),
                pl.BlockSpec((1, V_pad), lambda i: (0, 0)),
            ],
            out_specs=pl.BlockSpec((tile_b, V_pad), lambda i: (i, 0)),
        ),
        compiler_params=pltpu.CompilerParams(
            dimension_semantics=("parallel",),
        ),
        interpret=interpret,
    )(ids, params["embw"], params["w1"], params["b1"], params["w2"], params["b2"])

    return out[:B, :V]


def reference_forward(inputs, embed_w, w1, b1, w2, b2):
    """Pure-JAX f32 reference mirroring the PyTorch forward."""
    B = inputs.shape[0]
    emb = jnp.take(embed_w, inputs, axis=0).reshape(B, -1)
    h = jax.nn.relu(emb @ w1.T + b1)
    logits = h @ w2.T + b2
    return jax.nn.log_softmax(logits, axis=-1)


def reference_forward_bf16(inputs, params):
    """Pure-JAX reference using the same bf16-cast operands as the kernel."""
    B = inputs.shape[0]
    V, K = params["V"], params["K"]
    embw = params["embw"][:V, :]                                   # bf16
    emb = jnp.take(embw, inputs, axis=0).reshape(B, K)
    h = jnp.dot(emb, params["w1"], preferred_element_type=jnp.float32) + params["b1"]
    h = jnp.maximum(h, 0.0)
    logits = (jnp.dot(h.astype(params["compute_dtype"]), params["w2"][:, :V],
                      preferred_element_type=jnp.float32) + params["b2"][:, :V])
    return jax.nn.log_softmax(logits, axis=-1)


if __name__ == "__main__":
    # Module-consistent small shapes.
    vocab_size = 64
    embedding_dim = 16
    context_size = 4
    hidden = 128

    key = jax.random.PRNGKey(0)
    k_emb, k_w1, k_b1, k_w2, k_b2, k_in1, k_in2 = jax.random.split(key, 7)

    # Deterministic synthetic parameters.
    embed_w = jax.random.normal(k_emb, (vocab_size, embedding_dim), jnp.float32)
    w1 = jax.random.normal(k_w1, (hidden, context_size * embedding_dim), jnp.float32) * 0.1
    b1 = jax.random.normal(k_b1, (hidden,), jnp.float32) * 0.1
    w2 = jax.random.normal(k_w2, (vocab_size, hidden), jnp.float32) * 0.1
    b2 = jax.random.normal(k_b2, (vocab_size,), jnp.float32) * 0.1

    params = prepare_params(embed_w, w1, b1, w2, b2)   # one-time transpose/pad/cast

    # --- small-batch check (module-scale shapes) ---
    batch = 8
    inputs = jax.random.randint(k_in1, (batch, context_size), 0, vocab_size, jnp.int32)
    log_probs = jax.block_until_ready(nplm_forward(inputs, params))

    ref_f32 = reference_forward(inputs, embed_w, w1, b1, w2, b2)
    ref_bf16 = reference_forward_bf16(inputs, params)
    assert log_probs.shape == (batch, vocab_size)
    assert jnp.allclose(log_probs, ref_bf16, atol=2e-4, rtol=2e-4), \
        "mismatch vs bf16-matched reference"
    assert jnp.allclose(log_probs, ref_f32, atol=5e-2, rtol=5e-2), \
        "mismatch vs f32 reference"
    assert jnp.allclose(jnp.sum(jnp.exp(log_probs), axis=-1), 1.0, atol=1e-3), \
        "log-probs do not normalize"

    # --- multi-tile check: exercises the batch grid + VMEM-resident weights ---
    batch2 = 260   # with tile_b=128 pads to 384 -> 3 grid steps
    inputs2 = jax.random.randint(k_in2, (batch2, context_size), 0, vocab_size, jnp.int32)
    out2 = jax.block_until_ready(nplm_forward(inputs2, params, tile_b=128))
    ref2 = reference_forward_bf16(inputs2, params)
    assert out2.shape == (batch2, vocab_size)
    assert jnp.allclose(out2, ref2, atol=2e-4, rtol=2e-4), "mismatch on multi-tile batch"

    # --- default (big-tile) path on the larger batch too ---
    out3 = jax.block_until_ready(nplm_forward(inputs2, params))     # tile_b=256 default
    assert jnp.allclose(out3, ref2, atol=2e-4, rtol=2e-4), "mismatch on big-tile batch"

    print("KERNEL_OK")
</pallas_src>

<mosaic_0001>
module attributes {stable_mosaic.version = 11 : i64} {
  func.func @_nplm_kernel(%arg0: i32, %arg1: memref<8x4xi32, #tpu.memory_space<vmem>>, %arg2: memref<128x16xbf16, #tpu.memory_space<vmem>>, %arg3: memref<64x128xbf16, #tpu.memory_space<vmem>>, %arg4: memref<1x128xf32, #tpu.memory_space<vmem>>, %arg5: memref<128x128xbf16, #tpu.memory_space<vmem>>, %arg6: memref<1x128xf32, #tpu.memory_space<vmem>>, %arg7: memref<8x128xf32, #tpu.memory_space<vmem>>) attributes {dimension_semantics = [#tpu.dimension_semantics<parallel>], iteration_bounds = array<i64: 1>, scalar_prefetch = 0 : i64, scratch_operands = 0 : i64, tpu.core_type = #tpu.core_type<tc>, window_params = [{transform_indices = @transform_0, window_bounds = array<i64: 8, 4>}, {pipeline_mode = #tpu.pipeline_mode<synchronous>, transform_indices = @transform_1, window_bounds = array<i64: 128, 16>}, {pipeline_mode = #tpu.pipeline_mode<synchronous>, transform_indices = @transform_2, window_bounds = array<i64: 64, 128>}, {pipeline_mode = #tpu.pipeline_mode<synchronous>, transform_indices = @transform_3, window_bounds = array<i64: 1, 128>}, {pipeline_mode = #tpu.pipeline_mode<synchronous>, transform_indices = @transform_4, window_bounds = array<i64: 128, 128>}, {pipeline_mode = #tpu.pipeline_mode<synchronous>, transform_indices = @transform_5, window_bounds = array<i64: 1, 128>}, {transform_indices = @transform_6, window_bounds = array<i64: 8, 128>}]} {
    %c0 = arith.constant 0 : index
    %c0_0 = arith.constant 0 : index
    %0 = vector.load %arg1[%c0, %c0_0] : memref<8x4xi32, #tpu.memory_space<vmem>>, vector<8x4xi32>
    %c0_1 = arith.constant 0 : index
    %c0_2 = arith.constant 0 : index
    %1 = vector.load %arg2[%c0_1, %c0_2] : memref<128x16xbf16, #tpu.memory_space<vmem>>, vector<128x16xbf16>
    %c0_3 = arith.constant 0 : index
    %c0_4 = arith.constant 0 : index
    %2 = vector.load %arg3[%c0_3, %c0_4] : memref<64x128xbf16, #tpu.memory_space<vmem>>, vector<64x128xbf16>
    %3 = tpu.iota {dimensions = array<i32: 1>} : vector<8x128xi32>
    %cst = arith.constant 0.000000e+00 : f32
    %4 = vector.broadcast %cst : f32 to vector<8x128xf32>
    %5 = vector.extract_strided_slice %0 {offsets = [0, 0], sizes = [8, 1], strides = [1, 1]} : vector<8x4xi32> to vector<8x1xi32>
    %6 = vector.broadcast %5 : vector<8x1xi32> to vector<8x128xi32>
    %7 = arith.cmpi eq, %3, %6 : vector<8x128xi32>
    %8 = arith.extui %7 : vector<8x128xi1> to vector<8x128xi32>
    %9 = arith.sitofp %8 : vector<8x128xi32> to vector<8x128xf32>
    %10 = arith.truncf %9 : vector<8x128xf32> to vector<8x128xbf16>
    %cst_5 = arith.constant dense<0.000000e+00> : vector<8x16xf32>
    %11 = tpu.matmul %10, %1, %cst_5 {dimension_numbers = #tpu.dot_dimension_numbers<[1], [0], [0], [1], [0, 0, 1, 1], [], []>} : vector<8x128xbf16>, vector<128x16xbf16>, vector<8x16xf32> -> vector<8x16xf32>
    %12 = arith.truncf %11 : vector<8x16xf32> to vector<8x16xbf16>
    %13 = vector.extract_strided_slice %2 {offsets = [0, 0], sizes = [16, 128], strides = [1, 1]} : vector<64x128xbf16> to vector<16x128xbf16>
    %cst_6 = arith.constant dense<0.000000e+00> : vector<8x128xf32>
    %14 = tpu.matmul %12, %13, %cst_6 {dimension_numbers = #tpu.dot_dimension_numbers<[1], [0], [0], [1], [0, 0, 1, 1], [], []>} : vector<8x16xbf16>, vector<16x128xbf16>, vector<8x128xf32> -> vector<8x128xf32>
    %15 = arith.addf %4, %14 : vector<8x128xf32>
    %16 = vector.extract_strided_slice %0 {offsets = [0, 1], sizes = [8, 1], strides = [1, 1]} : vector<8x4xi32> to vector<8x1xi32>
    %17 = vector.broadcast %16 : vector<8x1xi32> to vector<8x128xi32>
    %18 = arith.cmpi eq, %3, %17 : vector<8x128xi32>
    %19 = arith.extui %18 : vector<8x128xi1> to vector<8x128xi32>
    %20 = arith.sitofp %19 : vector<8x128xi32> to vector<8x128xf32>
    %21 = arith.truncf %20 : vector<8x128xf32> to vector<8x128xbf16>
    %cst_7 = arith.constant dense<0.000000e+00> : vector<8x16xf32>
    %22 = tpu.matmul %21, %1, %cst_7 {dimension_numbers = #tpu.dot_dimension_numbers<[1], [0], [0], [1], [0, 0, 1, 1], [], []>} : vector<8x128xbf16>, vector<128x16xbf16>, vector<8x16xf32> -> vector<8x16xf32>
    %23 = arith.truncf %22 : vector<8x16xf32> to vector<8x16xbf16>
    %24 = vector.extract_strided_slice %2 {offsets = [16, 0], sizes = [16, 128], strides = [1, 1]} : vector<64x128xbf16> to vector<16x128xbf16>
    %cst_8 = arith.constant dense<0.000000e+00> : vector<8x128xf32>
    %25 = tpu.matmul %23, %24, %cst_8 {dimension_numbers = #tpu.dot_dimension_numbers<[1], [0], [0], [1], [0, 0, 1, 1], [], []>} : vector<8x16xbf16>, vector<16x128xbf16>, vector<8x128xf32> -> vector<8x128xf32>
    %26 = arith.addf %15, %25 : vector<8x128xf32>
    %27 = vector.extract_strided_slice %0 {offsets = [0, 2], sizes = [8, 1], strides = [1, 1]} : vector<8x4xi32> to vector<8x1xi32>
    %28 = vector.broadcast %27 : vector<8x1xi32> to vector<8x128xi32>
    %29 = arith.cmpi eq, %3, %28 : vector<8x128xi32>
    %30 = arith.extui %29 : vector<8x128xi1> to vector<8x128xi32>
    %31 = arith.sitofp %30 : vector<8x128xi32> to vector<8x128xf32>
    %32 = arith.truncf %31 : vector<8x128xf32> to vector<8x128xbf16>
    %cst_9 = arith.constant dense<0.000000e+00> : vector<8x16xf32>
    %33 = tpu.matmul %32, %1, %cst_9 {dimension_numbers = #tpu.dot_dimension_numbers<[1], [0], [0], [1], [0, 0, 1, 1], [], []>} : vector<8x128xbf16>, vector<128x16xbf16>, vector<8x16xf32> -> vector<8x16xf32>
    %34 = arith.truncf %33 : vector<8x16xf32> to vector<8x16xbf16>
    %35 = vector.extract_strided_slice %2 {offsets = [32, 0], sizes = [16, 128], strides = [1, 1]} : vector<64x128xbf16> to vector<16x128xbf16>
    %cst_10 = arith.constant dense<0.000000e+00> : vector<8x128xf32>
    %36 = tpu.matmul %34, %35, %cst_10 {dimension_numbers = #tpu.dot_dimension_numbers<[1], [0], [0], [1], [0, 0, 1, 1], [], []>} : vector<8x16xbf16>, vector<16x128xbf16>, vector<8x128xf32> -> vector<8x128xf32>
    %37 = arith.addf %26, %36 : vector<8x128xf32>
    %38 = vector.extract_strided_slice %0 {offsets = [0, 3], sizes = [8, 1], strides = [1, 1]} : vector<8x4xi32> to vector<8x1xi32>
    %39 = vector.broadcast %38 : vector<8x1xi32> to vector<8x128xi32>
    %40 = arith.cmpi eq, %3, %39 : vector<8x128xi32>
    %41 = arith.extui %40 : vector<8x128xi1> to vector<8x128xi32>
    %42 = arith.sitofp %41 : vector<8x128xi32> to vector<8x128xf32>
    %43 = arith.truncf %42 : vector<8x128xf32> to vector<8x128xbf16>
    %cst_11 = arith.constant dense<0.000000e+00> : vector<8x16xf32>
    %44 = tpu.matmul %43, %1, %cst_11 {dimension_numbers = #tpu.dot_dimension_numbers<[1], [0], [0], [1], [0, 0, 1, 1], [], []>} : vector<8x128xbf16>, vector<128x16xbf16>, vector<8x16xf32> -> vector<8x16xf32>
    %45 = arith.truncf %44 : vector<8x16xf32> to vector<8x16xbf16>
    %46 = vector.extract_strided_slice %2 {offsets = [48, 0], sizes = [16, 128], strides = [1, 1]} : vector<64x128xbf16> to vector<16x128xbf16>
    %cst_12 = arith.constant dense<0.000000e+00> : vector<8x128xf32>
    %47 = tpu.matmul %45, %46, %cst_12 {dimension_numbers = #tpu.dot_dimension_numbers<[1], [0], [0], [1], [0, 0, 1, 1], [], []>} : vector<8x16xbf16>, vector<16x128xbf16>, vector<8x128xf32> -> vector<8x128xf32>
    %48 = arith.addf %37, %47 : vector<8x128xf32>
    %c0_13 = arith.constant 0 : index
    %c0_14 = arith.constant 0 : index
    %49 = vector.load %arg4[%c0_13, %c0_14] : memref<1x128xf32, #tpu.memory_space<vmem>>, vector<1x128xf32>
    %50 = vector.broadcast %49 : vector<1x128xf32> to vector<8x128xf32>
    %51 = arith.addf %48, %50 : vector<8x128xf32>
    %cst_15 = arith.constant 0.000000e+00 : f32
    %52 = vector.broadcast %cst_15 : f32 to vector<8x128xf32>
    %53 = arith.maximumf %51, %52 : vector<8x128xf32>
    %54 = arith.truncf %53 : vector<8x128xf32> to vector<8x128xbf16>
    %c0_16 = arith.constant 0 : index
    %c0_17 = arith.constant 0 : index
    %55 = vector.load %arg5[%c0_16, %c0_17] : memref<128x128xbf16, #tpu.memory_space<vmem>>, vector<128x128xbf16>
    %cst_18 = arith.constant dense<0.000000e+00> : vector<8x128xf32>
    %56 = tpu.matmul %54, %55, %cst_18 {dimension_numbers = #tpu.dot_dimension_numbers<[1], [0], [0], [1], [0, 0, 1, 1], [], []>} : vector<8x128xbf16>, vector<128x128xbf16>, vector<8x128xf32> -> vector<8x128xf32>
    %c0_19 = arith.constant 0 : index
    %c0_20 = arith.constant 0 : index
    %57 = vector.load %arg6[%c0_19, %c0_20] : memref<1x128xf32, #tpu.memory_space<vmem>>, vector<1x128xf32>
    %58 = vector.broadcast %57 : vector<1x128xf32> to vector<8x128xf32>
    %59 = arith.addf %56, %58 : vector<8x128xf32>
    %cst_21 = arith.constant dense<0xFF800000> : vector<8xf32>
    %60 = vector.multi_reduction <maximumf>, %59, %cst_21 [1] : vector<8x128xf32> to vector<8xf32>
    %61 = vector.shape_cast %60 : vector<8xf32> to vector<8x1xf32>
    %62 = vector.broadcast %61 : vector<8x1xf32> to vector<8x128xf32>
    %63 = arith.subf %59, %62 : vector<8x128xf32>
    %64 = math.exp %63 : vector<8x128xf32>
    %cst_22 = arith.constant dense<0.000000e+00> : vector<8xf32>
    %65 = vector.multi_reduction <add>, %64, %cst_22 [1] : vector<8x128xf32> to vector<8xf32>
    %66 = vector.shape_cast %65 : vector<8xf32> to vector<8x1xf32>
    %67 = math.log %66 : vector<8x1xf32>
    %68 = vector.broadcast %67 : vector<8x1xf32> to vector<8x128xf32>
    %69 = arith.subf %63, %68 : vector<8x128xf32>
    %c0_23 = arith.constant 0 : index
    %c0_24 = arith.constant 0 : index
    %70 = vector.load %arg7[%c0_23, %c0_24] : memref<8x128xf32, #tpu.memory_space<vmem>>, vector<8x128xf32>
    tpu.vector_store %arg7[%c0_23, %c0_24], %69 {strides = array<i32>} : memref<8x128xf32, #tpu.memory_space<vmem>>, vector<8x128xf32>,
    return
  }
  func.func @transform_0(%arg0: i32) -> (i32, i32) {
    %c0_i32 = arith.constant 0 : i32
    %c0_i32_0 = arith.constant 0 : i32
    return %arg0, %c0_i32 : i32, i32
  }
  func.func @transform_1(%arg0: i32) -> (i32, i32) {
    %c0_i32 = arith.constant 0 : i32
    %c0_i32_0 = arith.constant 0 : i32
    %c0_i32_1 = arith.constant 0 : i32
    return %c0_i32, %c0_i32_0 : i32, i32
  }
  func.func @transform_2(%arg0: i32) -> (i32, i32) {
    %c0_i32 = arith.constant 0 : i32
    %c0_i32_0 = arith.constant 0 : i32
    %c0_i32_1 = arith.constant 0 : i32
    return %c0_i32, %c0_i32_0 : i32, i32
  }
  func.func @transform_3(%arg0: i32) -> (i32, i32) {
    %c0_i32 = arith.constant 0 : i32
    %c0_i32_0 = arith.constant 0 : i32
    %c0_i32_1 = arith.constant 0 : i32
    return %c0_i32, %c0_i32_0 : i32, i32
  }
  func.func @transform_4(%arg0: i32) -> (i32, i32) {
    %c0_i32 = arith.constant 0 : i32
    %c0_i32_0 = arith.constant 0 : i32
    %c0_i32_1 = arith.constant 0 : i32
    return %c0_i32, %c0_i32_0 : i32, i32
  }
  func.func @transform_5(%arg0: i32) -> (i32, i32) {
    %c0_i32 = arith.constant 0 : i32
    %c0_i32_0 = arith.constant 0 : i32
    %c0_i32_1 = arith.constant 0 : i32
    return %c0_i32, %c0_i32_0 : i32, i32
  }
  func.func @transform_6(%arg0: i32) -> (i32, i32) {
    %c0_i32 = arith.constant 0 : i32
    %c0_i32_0 = arith.constant 0 : i32
    return %arg0, %c0_i32 : i32, i32
  }
}

</mosaic_0001>

<llo_original>
// kernel: tpu_custom_call.1
$region0: #{tpu_custom_call.1}
  #allocation0 [shape = 'u32[]', space=smem, size = 0x4, offset = 0x4, fixed_abs, tag = 'smem constant byte address 0x4 - core index']
  #allocation1 [shape = 'u32[144,128]{1,0:T(1,128)}', space=vmem, size = 0x12000, scoped, tag = 'internal scratch']
  %s0 = inlined_call_operand.vmem [shape: s32[8,4], index: 0, kind: input, shape index: {}]
  %s1 = inlined_call_operand.vmem [shape: bf16[128,16], index: 1, kind: input, shape index: {}]
  %s2 = inlined_call_operand.vmem [shape: bf16[64,128], index: 2, kind: input, shape index: {}]
  %s3 = inlined_call_operand.vmem [shape: f32[1,128], index: 3, kind: input, shape index: {}]
  %s4 = inlined_call_operand.vmem [shape: bf16[128,128], index: 4, kind: input, shape index: {}]
  %s5 = inlined_call_operand.vmem [shape: f32[1,128], index: 5, kind: input, shape index: {}]
  %s6 = inlined_call_operand.hbm [shape: f32[8,128], index: 6, kind: output, shape index: {}]
  %s7 = sld [smem:[#allocation0]]
  $region34: #{tpu_custom_call.1} parent=0
    _
  %s9 = ssub.s32 1, %s7
  %s10 = scalar_select 0, %s9, %s7
  $region1: #{tpu_custom_call.1} parent=0
    #allocation2 [shape = 'u8[4096]{0}', space=vmem, size = 0x1000, scoped, tag = 'output window, operand 0, single buffered']
    #allocation3 [shape = 's32[1]{0}', space=sflag, size = 0x4, scoped, tag = 'scoped memory for tpu_custom_call.1']
    %11 = vsyncpa [#allocation3], 0
    // Predicated region
    $region2: #{tpu_custom_call.1} parent=1 // pred_check
      _
    $region3: #{tpu_custom_call.1} parent=1 // pred_check_branch
      %13 = sbr.rel (0) target = $region5
    $region4: #{tpu_custom_call.1} parent=1 // pred_region
      _
    $region5: #{tpu_custom_call.1} parent=1 // pred_fallthru
      _
    // Predicated region
    $region6: #{tpu_custom_call.1} parent=1 // pred_check
      _
    $region7: #{tpu_custom_call.1} parent=1 // pred_check_branch
      %15 = sbr.rel (0) target = $region9
    $region8: #{tpu_custom_call.1} parent=1 // pred_region
      _
    $region9: #{tpu_custom_call.1} parent=1 // pred_fallthru
      _
    // Predicated region
    $region10: #{tpu_custom_call.1} parent=1 // pred_check
      _
    $region11: #{tpu_custom_call.1} parent=1 // pred_check_branch
      %17 = sbr.rel (0) target = $region13
    $region12: #{tpu_custom_call.1} parent=1 // pred_region
      _
    $region13: #{tpu_custom_call.1} parent=1 // pred_fallthru
      _
    // Predicated region
    $region14: #{tpu_custom_call.1} parent=1 // pred_check
      _
    $region15: #{tpu_custom_call.1} parent=1 // pred_check_branch
      %19 = sbr.rel (0) target = $region17
    $region16: #{tpu_custom_call.1} parent=1 // pred_region
      _
    $region17: #{tpu_custom_call.1} parent=1 // pred_fallthru
      _
    // Predicated region
    $region18: #{tpu_custom_call.1} parent=1 // pred_check
      _
    $region19: #{tpu_custom_call.1} parent=1 // pred_check_branch
      %21 = sbr.rel (0) target = $region21
    $region20: #{tpu_custom_call.1} parent=1 // pred_region
      _
    $region21: #{tpu_custom_call.1} parent=1 // pred_fallthru
      _
    // Predicated region
    $region22: #{tpu_custom_call.1} parent=1 // pred_check
      _
    $region23: #{tpu_custom_call.1} parent=1 // pred_check_branch
      %23 = sbr.rel (0) target = $region25
    $region24: #{tpu_custom_call.1} parent=1 // pred_region
      _
    $region25: #{tpu_custom_call.1} parent=1 // pred_fallthru
      _
    %v25 = vld [vmem:[%s0] sm:$0xff]
    %v26 = vld [vmem:[%s1] sm:$0xf]
    %v27 = vld [vmem:[%s1 + $0x4] sm:$0xf]
    %v28 = vld [vmem:[%s1 + $0x8] sm:$0xf]
    %v29 = vld [vmem:[%s1 + $0xc] sm:$0xf]
    %v30 = vld [vmem:[%s1 + $0x10] sm:$0xf]
    %v31 = vld [vmem:[%s1 + $0x14] sm:$0xf]
    %v32 = vld [vmem:[%s1 + $0x18] sm:$0xf]
    %v33 = vld [vmem:[%s1 + $0x1c] sm:$0xf]
    %v34 = vld [vmem:[%s1 + $0x20] sm:$0xf]
    %v35 = vld [vmem:[%s1 + $0x24] sm:$0xf]
    %v36 = vld [vmem:[%s1 + $0x28] sm:$0xf]
    %v37 = vld [vmem:[%s1 + $0x2c] sm:$0xf]
    %v38 = vld [vmem:[%s1 + $0x30] sm:$0xf]
    %v39 = vld [vmem:[%s1 + $0x34] sm:$0xf]
    %v40 = vld [vmem:[%s1 + $0x38] sm:$0xf]
    %v41 = vld [vmem:[%s1 + $0x3c] sm:$0xf]
    %v42 = vld [vmem:[%s2] sm:$0xf]
    %v43 = vld [vmem:[%s2 + $0x4] sm:$0xf]
    %v44 = vld [vmem:[%s2 + $0x8] sm:$0xf]
    %v45 = vld [vmem:[%s2 + $0xc] sm:$0xf]
    %v46 = vld [vmem:[%s2 + $0x10] sm:$0xf]
    %v47 = vld [vmem:[%s2 + $0x14] sm:$0xf]
    %v48 = vld [vmem:[%s2 + $0x18] sm:$0xf]
    %v49 = vld [vmem:[%s2 + $0x1c] sm:$0xf]
    %v50 = vlaneseq
    %v51 = vand.u32 %v50, 127
    %52 = vset.pattern.permute.xlu0 0
    %53 = vperm.xlu0 %52, %v25
    %v54 = vpop.permute.xlu0 %53
    %vm55 = vcmp.eq.s32.totalorder %v51, %v54
    %v56 = vsel %vm55, 1, 0
    %v57 = vcvt.s32.f32 %v56
    %v58 = vpack.c.bf16 %v57, %v57
    %v75 = vunpack.c.l.b16 %v26
    %v76 = vunpack.c.l.b16 %v27
    %v77 = vunpack.c.l.b16 %v28
    %v78 = vunpack.c.l.b16 %v29
    %v79 = vunpack.c.l.b16 %v30
    %v80 = vunpack.c.l.b16 %v31
    %v81 = vunpack.c.l.b16 %v32
    %v82 = vunpack.c.l.b16 %v33
    %v83 = vunpack.c.l.b16 %v34
    %v84 = vunpack.c.l.b16 %v35
    %v85 = vunpack.c.l.b16 %v36
    %v86 = vunpack.c.l.b16 %v37
    %v87 = vunpack.c.l.b16 %v38
    %v88 = vunpack.c.l.b16 %v39
    %v89 = vunpack.c.l.b16 %v40
    %v90 = vunpack.c.l.b16 %v41
    %v91 = vpack.c.b16 %v76, %v75
    %v92 = vpack.c.b16 %v78, %v77
    %v93 = vpack.c.b16 %v80, %v79
    %v94 = vpack.c.b16 %v82, %v81
    %v95 = vpack.c.b16 %v84, %v83
    %v96 = vpack.c.b16 %v86, %v85
    %v97 = vpack.c.b16 %v88, %v87
    %v98 = vpack.c.b16 %v90, %v89
    %107 = vmatprep.subr.bf16.mxu0 0
    %108 = vmatpush1.bf16.msra.mxu0 %v91
    %109 = vmatprep.subr.bf16.mxu0 0
    %110 = vmatpush1.bf16.msra.mxu0 %v92
    %111 = vmatprep.subr.bf16.mxu0 0
    %112 = vmatpush1.bf16.msra.mxu0 %v93
    %113 = vmatprep.subr.bf16.mxu0 0
    %114 = vmatpush1.bf16.msra.mxu0 %v94
    %115 = vmatprep.subr.bf16.mxu0 0
    %116 = vmatpush1.bf16.msra.mxu0 %v95
    %117 = vmatprep.subr.bf16.mxu0 0
    %118 = vmatpush1.bf16.msra.mxu0 %v96
    %119 = vmatprep.subr.bf16.mxu0 0
    %120 = vmatpush1.bf16.msra.mxu0 %v97
    %121 = vmatprep.subr.bf16.mxu0 0
    %122 = vmatpush1.bf16.msra.mxu0 %v98
    %123 = vmatprep.subr.bf16.mxu0 0
    %124 = vmatpush1.bf16.msra.mxu0 0
    %125 = vmatprep.subr.bf16.mxu0 0
    %126 = vmatpush1.bf16.msra.mxu0 0
    %127 = vmatprep.subr.bf16.mxu0 0
    %128 = vmatpush1.bf16.msra.mxu0 0
    %129 = vmatprep.subr.bf16.mxu0 0
    %130 = vmatpush1.bf16.msra.mxu0 0
    %131 = vmatprep.subr.bf16.mxu0 0
    %132 = vmatpush1.bf16.msra.mxu0 0
    %133 = vmatprep.subr.bf16.mxu0 0
    %134 = vmatpush1.bf16.msra.mxu0 0
    %135 = vmatprep.subr.bf16.mxu0 0
    %136 = vmatpush1.bf16.msra.mxu0 0
    %137 = vmatprep.subr.bf16.mxu0 0
    %138 = vmatpush1.bf16.msra.mxu0 0
    %139 = vmatprep.mubr.bf16.mxu0 0
    %140 = vmatmul.mubr.bf16.gmra.mrb[0].mxu0 %v58
    %v141 = vpop.f32.mrb[0].mxu0
    %v142 = vadd.f32 0.0, %v141
    %v143 = vpop.f32.mrb[0].mxu0
    %v144 = vpop.f32.mrb[0].mxu0
    %v145 = vpop.f32.mrb[0].mxu0
    %146 = vdwg.mxu0
    %v147 = vpack.c.bf16 %v142, %v142
    %148 = vset.pattern.permute.xlu0 1
    %149 = vperm.xlu0 %148, %v25
    %v150 = vpop.permute.xlu0 %149
    %vm151 = vcmp.eq.s32.totalorder %v51, %v150
    %v152 = vsel %vm151, 1, 0
    %v153 = vcvt.s32.f32 %v152
    %v154 = vpack.c.bf16 %v153, %v153
    %155 = vmatprep.subr.bf16.mxu0 0
    %156 = vmatpush1.bf16.msra.mxu0 %v91
    %157 = vmatprep.subr.bf16.mxu0 0
    %158 = vmatpush1.bf16.msra.mxu0 %v92
    %159 = vmatprep.subr.bf16.mxu0 0
    %160 = vmatpush1.bf16.msra.mxu0 %v93
    %161 = vmatprep.subr.bf16.mxu0 0
    %162 = vmatpush1.bf16.msra.mxu0 %v94
    %163 = vmatprep.subr.bf16.mxu0 0
    %164 = vmatpush1.bf16.msra.mxu0 %v95
    %165 = vmatprep.subr.bf16.mxu0 0
    %166 = vmatpush1.bf16.msra.mxu0 %v96
    %167 = vmatprep.subr.bf16.mxu0 0
    %168 = vmatpush1.bf16.msra.mxu0 %v97
    %169 = vmatprep.subr.bf16.mxu0 0
    %170 = vmatpush1.bf16.msra.mxu0 %v98
    %171 = vmatprep.subr.bf16.mxu0 0
    %172 = vmatpush1.bf16.msra.mxu0 0
    %173 = vmatprep.subr.bf16.mxu0 0
    %174 = vmatpush1.bf16.msra.mxu0 0
    %175 = vmatprep.subr.bf16.mxu0 0
    %176 = vmatpush1.bf16.msra.mxu0 0
    %177 = vmatprep.subr.bf16.mxu0 0
    %178 = vmatpush1.bf16.msra.mxu0 0
    %179 = vmatprep.subr.bf16.mxu0 0
    %180 = vmatpush1.bf16.msra.mxu0 0
    %181 = vmatprep.subr.bf16.mxu0 0
    %182 = vmatpush1.bf16.msra.mxu0 0
    %183 = vmatprep.subr.bf16.mxu0 0
    %184 = vmatpush1.bf16.msra.mxu0 0
    %185 = vmatprep.subr.bf16.mxu0 0
    %186 = vmatpush1.bf16.msra.mxu0 0
    %187 = vmatprep.mubr.bf16.mxu0 0
    %188 = vmatmul.mubr.bf16.gmra.mrb[0].mxu0 %v154
    %v189 = vpop.f32.mrb[0].mxu0
    %v190 = vadd.f32 0.0, %v189
    %v191 = vpop.f32.mrb[0].mxu0
    %v192 = vpop.f32.mrb[0].mxu0
    %v193 = vpop.f32.mrb[0].mxu0
    %194 = vdwg.mxu0
    %v195 = vpack.c.bf16 %v190, %v190
    %v198 = vunpack.c.l.b16 %v44
    %v199 = vunpack.c.l.b16 %v45
    %v200 = vpack.c.b16 %v199, %v198
    %vm202 = vcmask 130048
    %v204 = vsel %vm202, %v195, 0
    %206 = vmatprep.subr.bf16.mxu0 0
    %207 = vmatpush1.bf16.msra.mxu0 %v200
    %208 = vmatprep.subr.bf16.mxu0 0
    %209 = vmatpush1.bf16.msra.mxu0 0
    %210 = vmatprep.subr.bf16.mxu0 0
    %211 = vmatpush1.bf16.msra.mxu0 0
    %212 = vmatprep.subr.bf16.mxu0 0
    %213 = vmatpush1.bf16.msra.mxu0 0
    %214 = vmatprep.subr.bf16.mxu0 0
    %215 = vmatpush1.bf16.msra.mxu0 0
    %216 = vmatprep.subr.bf16.mxu0 0
    %217 = vmatpush1.bf16.msra.mxu0 0
    %218 = vmatprep.subr.bf16.mxu0 0
    %219 = vmatpush1.bf16.msra.mxu0 0
    %220 = vmatprep.subr.bf16.mxu0 0
    %221 = vmatpush1.bf16.msra.mxu0 0
    %222 = vmatprep.subr.bf16.mxu0 0
    %223 = vmatpush1.bf16.msra.mxu0 0
    %224 = vmatprep.subr.bf16.mxu0 0
    %225 = vmatpush1.bf16.msra.mxu0 0
    %226 = vmatprep.subr.bf16.mxu0 0
    %227 = vmatpush1.bf16.msra.mxu0 0
    %228 = vmatprep.subr.bf16.mxu0 0
    %229 = vmatpush1.bf16.msra.mxu0 0
    %230 = vmatprep.subr.bf16.mxu0 0
    %231 = vmatpush1.bf16.msra.mxu0 0
    %232 = vmatprep.subr.bf16.mxu0 0
    %233 = vmatpush1.bf16.msra.mxu0 0
    %234 = vmatprep.subr.bf16.mxu0 0
    %235 = vmatpush1.bf16.msra.mxu0 0
    %236 = vmatprep.subr.bf16.mxu0 0
    %237 = vmatpush1.bf16.msra.mxu0 0
    %238 = vmatprep.mubr.bf16.mxu0 0
    %239 = vmatmul.mubr.bf16.gmra.mrb[0].mxu0 %v204
    %v240 = vpop.f32.mrb[0].mxu0
    %v241 = vadd.f32 0.0, %v240
    %v242 = vpop.f32.mrb[0].mxu0
    %v243 = vpop.f32.mrb[0].mxu0
    %v244 = vpop.f32.mrb[0].mxu0
    %245 = vdwg.mxu0
    %v248 = vunpack.c.l.b16 %v42
    %v249 = vunpack.c.l.b16 %v43
    %v250 = vpack.c.b16 %v249, %v248
    %v253 = vsel %vm202, %v147, 0
    %255 = vmatprep.subr.bf16.mxu0 0
    %256 = vmatpush1.bf16.msra.mxu0 %v250
    %257 = vmatprep.subr.bf16.mxu0 0
    %258 = vmatpush1.bf16.msra.mxu0 0
    %259 = vmatprep.subr.bf16.mxu0 0
    %260 = vmatpush1.bf16.msra.mxu0 0
    %261 = vmatprep.subr.bf16.mxu0 0
    %262 = vmatpush1.bf16.msra.mxu0 0
    %263 = vmatprep.subr.bf16.mxu0 0
    %264 = vmatpush1.bf16.msra.mxu0 0
    %265 = vmatprep.subr.bf16.mxu0 0
    %266 = vmatpush1.bf16.msra.mxu0 0
    %267 = vmatprep.subr.bf16.mxu0 0
    %268 = vmatpush1.bf16.msra.mxu0 0
    %269 = vmatprep.subr.bf16.mxu0 0
    %270 = vmatpush1.bf16.msra.mxu0 0
    %271 = vmatprep.subr.bf16.mxu0 0
    %272 = vmatpush1.bf16.msra.mxu0 0
    %273 = vmatprep.subr.bf16.mxu0 0
    %274 = vmatpush1.bf16.msra.mxu0 0
    %275 = vmatprep.subr.bf16.mxu0 0
    %276 = vmatpush1.bf16.msra.mxu0 0
    %277 = vmatprep.subr.bf16.mxu0 0
    %278 = vmatpush1.bf16.msra.mxu0 0
    %279 = vmatprep.subr.bf16.mxu0 0
    %280 = vmatpush1.bf16.msra.mxu0 0
    %281 = vmatprep.subr.bf16.mxu0 0
    %282 = vmatpush1.bf16.msra.mxu0 0
    %283 = vmatprep.subr.bf16.mxu0 0
    %284 = vmatpush1.bf16.msra.mxu0 0
    %285 = vmatprep.subr.bf16.mxu0 0
    %286 = vmatpush1.bf16.msra.mxu0 0
    %287 = vmatprep.mubr.bf16.mxu0 0
    %288 = vmatmul.mubr.bf16.gmra.mrb[0].mxu0 %v253
    %v289 = vpop.f32.mrb[0].mxu0
    %v290 = vadd.f32 %v241, %v289
    %v291 = vpop.f32.mrb[0].mxu0
    %v292 = vpop.f32.mrb[0].mxu0
    %v293 = vpop.f32.mrb[0].mxu0
    %294 = vdwg.mxu0
    %295 = vset.pattern.permute.xlu0 2
    %296 = vperm.xlu0 %295, %v25
    %v297 = vpop.permute.xlu0 %296
    %vm298 = vcmp.eq.s32.totalorder %v51, %v297
    %v299 = vsel %vm298, 1, 0
    %v300 = vcvt.s32.f32 %v299
    %v301 = vpack.c.bf16 %v300, %v300
    %302 = vmatprep.subr.bf16.mxu0 0
    %303 = vmatpush1.bf16.msra.mxu0 %v91
    %304 = vmatprep.subr.bf16.mxu0 0
    %305 = vmatpush1.bf16.msra.mxu0 %v92
    %306 = vmatprep.subr.bf16.mxu0 0
    %307 = vmatpush1.bf16.msra.mxu0 %v93
    %308 = vmatprep.subr.bf16.mxu0 0
    %309 = vmatpush1.bf16.msra.mxu0 %v94
    %310 = vmatprep.subr.bf16.mxu0 0
    %311 = vmatpush1.bf16.msra.mxu0 %v95
    %312 = vmatprep.subr.bf16.mxu0 0
    %313 = vmatpush1.bf16.msra.mxu0 %v96
    %314 = vmatprep.subr.bf16.mxu0 0
    %315 = vmatpush1.bf16.msra.mxu0 %v97
    %316 = vmatprep.subr.bf16.mxu0 0
    %317 = vmatpush1.bf16.msra.mxu0 %v98
    %318 = vmatprep.subr.bf16.mxu0 0
    %319 = vmatpush1.bf16.msra.mxu0 0
    %320 = vmatprep.subr.bf16.mxu0 0
    %321 = vmatpush1.bf16.msra.mxu0 0
    %322 = vmatprep.subr.bf16.mxu0 0
    %323 = vmatpush1.bf16.msra.mxu0 0
    %324 = vmatprep.subr.bf16.mxu0 0
    %325 = vmatpush1.bf16.msra.mxu0 0
    %326 = vmatprep.subr.bf16.mxu0 0
    %327 = vmatpush1.bf16.msra.mxu0 0
    %328 = vmatprep.subr.bf16.mxu0 0
    %329 = vmatpush1.bf16.msra.mxu0 0
    %330 = vmatprep.subr.bf16.mxu0 0
    %331 = vmatpush1.bf16.msra.mxu0 0
    %332 = vmatprep.subr.bf16.mxu0 0
    %333 = vmatpush1.bf16.msra.mxu0 0
    %334 = vmatprep.mubr.bf16.mxu0 0
    %335 = vmatmul.mubr.bf16.gmra.mrb[0].mxu0 %v301
    %v336 = vpop.f32.mrb[0].mxu0
    %v337 = vadd.f32 0.0, %v336
    %v338 = vpop.f32.mrb[0].mxu0
    %v339 = vpop.f32.mrb[0].mxu0
    %v340 = vpop.f32.mrb[0].mxu0
    %341 = vdwg.mxu0
    %v342 = vpack.c.bf16 %v337, %v337
    %v345 = vunpack.c.l.b16 %v46
    %v346 = vunpack.c.l.b16 %v47
    %v347 = vpack.c.b16 %v346, %v345
    %v350 = vsel %vm202, %v342, 0
    %352 = vmatprep.subr.bf16.mxu0 0
    %353 = vmatpush1.bf16.msra.mxu0 %v347
    %354 = vmatprep.subr.bf16.mxu0 0
    %355 = vmatpush1.bf16.msra.mxu0 0
    %356 = vmatprep.subr.bf16.mxu0 0
    %357 = vmatpush1.bf16.msra.mxu0 0
    %358 = vmatprep.subr.bf16.mxu0 0
    %359 = vmatpush1.bf16.msra.mxu0 0
    %360 = vmatprep.subr.bf16.mxu0 0
    %361 = vmatpush1.bf16.msra.mxu0 0
    %362 = vmatprep.subr.bf16.mxu0 0
    %363 = vmatpush1.bf16.msra.mxu0 0
    %364 = vmatprep.subr.bf16.mxu0 0
    %365 = vmatpush1.bf16.msra.mxu0 0
    %366 = vmatprep.subr.bf16.mxu0 0
    %367 = vmatpush1.bf16.msra.mxu0 0
    %368 = vmatprep.subr.bf16.mxu0 0
    %369 = vmatpush1.bf16.msra.mxu0 0
    %370 = vmatprep.subr.bf16.mxu0 0
    %371 = vmatpush1.bf16.msra.mxu0 0
    %372 = vmatprep.subr.bf16.mxu0 0
    %373 = vmatpush1.bf16.msra.mxu0 0
    %374 = vmatprep.subr.bf16.mxu0 0
    %375 = vmatpush1.bf16.msra.mxu0 0
    %376 = vmatprep.subr.bf16.mxu0 0
    %377 = vmatpush1.bf16.msra.mxu0 0
    %378 = vmatprep.subr.bf16.mxu0 0
    %379 = vmatpush1.bf16.msra.mxu0 0
    %380 = vmatprep.subr.bf16.mxu0 0
    %381 = vmatpush1.bf16.msra.mxu0 0
    %382 = vmatprep.subr.bf16.mxu0 0
    %383 = vmatpush1.bf16.msra.mxu0 0
    %384 = vmatprep.mubr.bf16.mxu0 0
    %385 = vmatmul.mubr.bf16.gmra.mrb[0].mxu0 %v350
    %v386 = vpop.f32.mrb[0].mxu0
    %v387 = vadd.f32 0.0, %v386
    %v388 = vpop.f32.mrb[0].mxu0
    %v389 = vpop.f32.mrb[0].mxu0
    %v390 = vpop.f32.mrb[0].mxu0
    %391 = vdwg.mxu0
    %v392 = vadd.f32 %v290, %v387
    %393 = vset.pattern.permute.xlu0 3
    %394 = vperm.xlu0 %393, %v25
    %v395 = vpop.permute.xlu0 %394
    %vm396 = vcmp.eq.s32.totalorder %v51, %v395
    %v397 = vsel %vm396, 1, 0
    %v398 = vcvt.s32.f32 %v397
    %v399 = vpack.c.bf16 %v398, %v398
    %400 = vmatprep.subr.bf16.mxu0 0
    %401 = vmatpush1.bf16.msra.mxu0 %v91
    %402 = vmatprep.subr.bf16.mxu0 0
    %403 = vmatpush1.bf16.msra.mxu0 %v92
    %404 = vmatprep.subr.bf16.mxu0 0
    %405 = vmatpush1.bf16.msra.mxu0 %v93
    %406 = vmatprep.subr.bf16.mxu0 0
    %407 = vmatpush1.bf16.msra.mxu0 %v94
    %408 = vmatprep.subr.bf16.mxu0 0
    %409 = vmatpush1.bf16.msra.mxu0 %v95
    %410 = vmatprep.subr.bf16.mxu0 0
    %411 = vmatpush1.bf16.msra.mxu0 %v96
    %412 = vmatprep.subr.bf16.mxu0 0
    %413 = vmatpush1.bf16.msra.mxu0 %v97
    %414 = vmatprep.subr.bf16.mxu0 0
    %415 = vmatpush1.bf16.msra.mxu0 %v98
    %416 = vmatprep.subr.bf16.mxu0 0
    %417 = vmatpush1.bf16.msra.mxu0 0
    %418 = vmatprep.subr.bf16.mxu0 0
    %419 = vmatpush1.bf16.msra.mxu0 0
    %420 = vmatprep.subr.bf16.mxu0 0
    %421 = vmatpush1.bf16.msra.mxu0 0
    %422 = vmatprep.subr.bf16.mxu0 0
    %423 = vmatpush1.bf16.msra.mxu0 0
    %424 = vmatprep.subr.bf16.mxu0 0
    %425 = vmatpush1.bf16.msra.mxu0 0
    %426 = vmatprep.subr.bf16.mxu0 0
    %427 = vmatpush1.bf16.msra.mxu0 0
    %428 = vmatprep.subr.bf16.mxu0 0
    %429 = vmatpush1.bf16.msra.mxu0 0
    %430 = vmatprep.subr.bf16.mxu0 0
    %431 = vmatpush1.bf16.msra.mxu0 0
    %432 = vmatprep.mubr.bf16.mxu0 0
    %433 = vmatmul.mubr.bf16.gmra.mrb[0].mxu0 %v399
    %v434 = vpop.f32.mrb[0].mxu0
    %v435 = vadd.f32 0.0, %v434
    %v436 = vpop.f32.mrb[0].mxu0
    %v437 = vpop.f32.mrb[0].mxu0
    %v438 = vpop.f32.mrb[0].mxu0
    %439 = vdwg.mxu0
    %v440 = vpack.c.bf16 %v435, %v435
    %v443 = vunpack.c.l.b16 %v48
    %v444 = vunpack.c.l.b16 %v49
    %v445 = vpack.c.b16 %v444, %v443
    %v448 = vsel %vm202, %v440, 0
    %450 = vmatprep.subr.bf16.mxu0 0
    %451 = vmatpush1.bf16.msra.mxu0 %v445
    %452 = vmatprep.subr.bf16.mxu0 0
    %453 = vmatpush1.bf16.msra.mxu0 0
    %454 = vmatprep.subr.bf16.mxu0 0
    %455 = vmatpush1.bf16.msra.mxu0 0
    %456 = vmatprep.subr.bf16.mxu0 0
    %457 = vmatpush1.bf16.msra.mxu0 0
    %458 = vmatprep.subr.bf16.mxu0 0
    %459 = vmatpush1.bf16.msra.mxu0 0
    %460 = vmatprep.subr.bf16.mxu0 0
    %461 = vmatpush1.bf16.msra.mxu0 0
    %462 = vmatprep.subr.bf16.mxu0 0
    %463 = vmatpush1.bf16.msra.mxu0 0
    %464 = vmatprep.subr.bf16.mxu0 0
    %465 = vmatpush1.bf16.msra.mxu0 0
    %466 = vmatprep.subr.bf16.mxu0 0
    %467 = vmatpush1.bf16.msra.mxu0 0
    %468 = vmatprep.subr.bf16.mxu0 0
    %469 = vmatpush1.bf16.msra.mxu0 0
    %470 = vmatprep.subr.bf16.mxu0 0
    %471 = vmatpush1.bf16.msra.mxu0 0
    %472 = vmatprep.subr.bf16.mxu0 0
    %473 = vmatpush1.bf16.msra.mxu0 0
    %474 = vmatprep.subr.bf16.mxu0 0
    %475 = vmatpush1.bf16.msra.mxu0 0
    %476 = vmatprep.subr.bf16.mxu0 0
    %477 = vmatpush1.bf16.msra.mxu0 0
    %478 = vmatprep.subr.bf16.mxu0 0
    %479 = vmatpush1.bf16.msra.mxu0 0
    %480 = vmatprep.subr.bf16.mxu0 0
    %481 = vmatpush1.bf16.msra.mxu0 0
    %482 = vmatprep.mubr.bf16.mxu0 0
    %483 = vmatmul.mubr.bf16.gmra.mrb[0].mxu0 %v448
    %v484 = vpop.f32.mrb[0].mxu0
    %v485 = vadd.f32 0.0, %v484
    %v486 = vpop.f32.mrb[0].mxu0
    %v487 = vpop.f32.mrb[0].mxu0
    %v488 = vpop.f32.mrb[0].mxu0
    %489 = vdwg.mxu0
    %v490 = vadd.f32 %v392, %v485
    %v491 = vld [vmem:[%s3] sm:$0x1]
    %v493 = vlaneseq
    %v494 = vshrl.u32 %v493, 7
    %v495 = vsub.s32 0, %v494
    %v496 = vrot.slane %v491, %v495
    %v498 = vadd.f32 %v490, %v496
    %v499 = vmax.f32 %v498, 0.0
    %v500 = vpack.c.bf16 %v499, %v499
    %v501 = vld [vmem:[%s4] sm:$0xf]
    %v502 = vld [vmem:[%s4 + $0x4] sm:$0xf]
    %v503 = vld [vmem:[%s4 + $0x8] sm:$0xf]
    %v504 = vld [vmem:[%s4 + $0xc] sm:$0xf]
    %v505 = vld [vmem:[%s4 + $0x10] sm:$0xf]
    %v506 = vld [vmem:[%s4 + $0x14] sm:$0xf]
    %v507 = vld [vmem:[%s4 + $0x18] sm:$0xf]
    %v508 = vld [vmem:[%s4 + $0x1c] sm:$0xf]
    %v509 = vld [vmem:[%s4 + $0x20] sm:$0xf]
    %v510 = vld [vmem:[%s4 + $0x24] sm:$0xf]
    %v511 = vld [vmem:[%s4 + $0x28] sm:$0xf]
    %v512 = vld [vmem:[%s4 + $0x2c] sm:$0xf]
    %v513 = vld [vmem:[%s4 + $0x30] sm:$0xf]
    %v514 = vld [vmem:[%s4 + $0x34] sm:$0xf]
    %v515 = vld [vmem:[%s4 + $0x38] sm:$0xf]
    %v516 = vld [vmem:[%s4 + $0x3c] sm:$0xf]
    %v517 = vld [vmem:[%s5] sm:$0x1]
    %v519 = vlaneseq
    %v520 = vshrl.u32 %v519, 7
    %v521 = vsub.s32 0, %v520
    %v522 = vrot.slane %v517, %v521
    %v540 = vunpack.c.l.b16 %v501
    %v541 = vunpack.c.l.b16 %v502
    %v542 = vunpack.c.l.b16 %v503
    %v543 = vunpack.c.l.b16 %v504
    %v544 = vunpack.c.l.b16 %v505
    %v545 = vunpack.c.l.b16 %v506
    %v546 = vunpack.c.l.b16 %v507
    %v547 = vunpack.c.l.b16 %v508
    %v548 = vunpack.c.l.b16 %v509
    %v549 = vunpack.c.l.b16 %v510
    %v550 = vunpack.c.l.b16 %v511
    %v551 = vunpack.c.l.b16 %v512
    %v552 = vunpack.c.l.b16 %v513
    %v553 = vunpack.c.l.b16 %v514
    %v554 = vunpack.c.l.b16 %v515
    %v555 = vunpack.c.l.b16 %v516
    %v556 = vpack.c.b16 %v541, %v540
    %v557 = vpack.c.b16 %v543, %v542
    %v558 = vpack.c.b16 %v545, %v544
    %v559 = vpack.c.b16 %v547, %v546
    %v560 = vpack.c.b16 %v549, %v548
    %v561 = vpack.c.b16 %v551, %v550
    %v562 = vpack.c.b16 %v553, %v552
    %v563 = vpack.c.b16 %v555, %v554
    %572 = vmatprep.subr.bf16.mxu0 0
    %573 = vmatpush1.bf16.msra.mxu0 %v556
    %574 = vmatprep.subr.bf16.mxu0 0
    %575 = vmatpush1.bf16.msra.mxu0 %v557
    %576 = vmatprep.subr.bf16.mxu0 0
    %577 = vmatpush1.bf16.msra.mxu0 %v558
    %578 = vmatprep.subr.bf16.mxu0 0
    %579 = vmatpush1.bf16.msra.mxu0 %v559
    %580 = vmatprep.subr.bf16.mxu0 0
    %581 = vmatpush1.bf16.msra.mxu0 %v560
    %582 = vmatprep.subr.bf16.mxu0 0
    %583 = vmatpush1.bf16.msra.mxu0 %v561
    %584 = vmatprep.subr.bf16.mxu0 0
    %585 = vmatpush1.bf16.msra.mxu0 %v562
    %586 = vmatprep.subr.bf16.mxu0 0
    %587 = vmatpush1.bf16.msra.mxu0 %v563
    %588 = vmatprep.subr.bf16.mxu0 0
    %589 = vmatpush1.bf16.msra.mxu0 0
    %590 = vmatprep.subr.bf16.mxu0 0
    %591 = vmatpush1.bf16.msra.mxu0 0
    %592 = vmatprep.subr.bf16.mxu0 0
    %593 = vmatpush1.bf16.msra.mxu0 0
    %594 = vmatprep.subr.bf16.mxu0 0
    %595 = vmatpush1.bf16.msra.mxu0 0
    %596 = vmatprep.subr.bf16.mxu0 0
    %597 = vmatpush1.bf16.msra.mxu0 0
    %598 = vmatprep.subr.bf16.mxu0 0
    %599 = vmatpush1.bf16.msra.mxu0 0
    %600 = vmatprep.subr.bf16.mxu0 0
    %601 = vmatpush1.bf16.msra.mxu0 0
    %602 = vmatprep.subr.bf16.mxu0 0
    %603 = vmatpush1.bf16.msra.mxu0 0
    %604 = vmatprep.mubr.bf16.mxu0 0
    %605 = vmatmul.mubr.bf16.gmra.mrb[0].mxu0 %v500
    %v606 = vpop.f32.mrb[0].mxu0
    %v607 = vadd.f32 %v522, %v606
    %v608 = vpop.f32.mrb[0].mxu0
    %v609 = vpop.f32.mrb[0].mxu0
    %v610 = vpop.f32.mrb[0].mxu0
    %611 = vdwg.mxu0
    %612 = vmax.xlane.f32.xlu0 %v607
    %v613 = vpop.xlane.xlu0 %612
    %v614 = vsub.f32 %v607, %v613
    %v615 = vmul.f32 %v614, 1.442695
    %v616 = vpow.pop %v615
    %617 = vadd.xlane.f32.xlu0 %v616
    %v618 = vpop.xlane.xlu0 %617
    %v619 = vlog2.pop %v618
    %v620 = vmul.f32 %v619, 0.6931472
    %v621 = vsub.f32 %v614, %v620
    %622 = vst [vmem:[#allocation2] sm:$0xff] %v621
    // Predicated region
    $region26: #{tpu_custom_call.1} parent=1 // pred_check
      _
    $region27: #{tpu_custom_call.1} parent=1 // pred_check_branch
      %624 = sbr.rel (0) target = $region29
    $region28: #{tpu_custom_call.1} parent=1 // pred_region
      %s626 = ssub.s32 128, 128
      %627 = vsyncadd [#allocation3], %s626
      %s629 = sshll.u32 [#allocation2], 4
      %s630 = int_to_ptr.vmem [resolvable:$true] %s629
      %632 = dma.vmem_to_hbm [thread:$0]  %s630, 128, %s6, [#allocation3]
    $region29: #{tpu_custom_call.1} parent=1 // pred_fallthru
      _
    // Predicated region
    $region30: #{tpu_custom_call.1} parent=1 // pred_check
      _
    $region31: #{tpu_custom_call.1} parent=1 // pred_check_branch
      %634 = sbr.rel (0) target = $region33
    $region32: #{tpu_custom_call.1} parent=1 // pred_region
      %635 = dma.done [#allocation3], 128
    $region33: #{tpu_custom_call.1} parent=1 // pred_fallthru
      _
    %636 = vsyncpa [#allocation3], 1

</llo_original>
